<compile_context>
chip_gen: v5e
topology: v5e:2x2
jax: 0.10.0
libtpu: 0.0.40
codegen_flags: <defaults>
</compile_context>

<pallas_src>
import functools

import jax
import jax.numpy as jnp
from jax.experimental import pallas as pl
from jax.experimental.pallas import tpu as pltpu


def _round_up(n, m):
    return (n + m - 1) // m * m


def _erf_approx(x):
    """Abramowitz & Stegun 7.1.26 erf approximation (max abs err ~1.5e-7)."""
    p = 0.3275911
    a1, a2, a3, a4, a5 = (0.254829592, -0.284496736, 1.421413741,
                          -1.453152027, 1.061405429)
    ax = jnp.abs(x)
    t = 1.0 / (1.0 + p * ax)
    poly = ((((a5 * t + a4) * t + a3) * t + a2) * t + a1) * t
    y = 1.0 - poly * jnp.exp(-ax * ax)
    return jnp.where(x >= 0, y, -y)


def _gelu_erf(x):
    """Exact (erf-based) GELU, as used by the original BERT/DeVLBert code."""
    return 0.5 * x * (1.0 + _erf_approx(x * 0.7071067811865476))


# Contract the last dim of both operands: x @ W^T with W in PyTorch (out, in).
_CONTRACT_LAST = (((1,), (1,)), ((), ()))


def _head_kernel(x_ref, w1_ref, b1_ref, g_ref, beta_ref, w2_ref, b2_ref,
                 o_ref, *, eps):
    # ----- transform dense (MXU, bf16 operands, f32 accumulate) -----
    x = x_ref[...].astype(jnp.bfloat16)
    h = jax.lax.dot_general(x, w1_ref[...], dimension_numbers=_CONTRACT_LAST,
                            preferred_element_type=jnp.float32)
    h = h + b1_ref[...].astype(jnp.float32)                  # (1, H) broadcast

    # ----- activation (erf GELU; exp goes to the EUP slot) -----
    h = _gelu_erf(h)

    # ----- TF-style LayerNorm (eps inside sqrt), two-pass stats -----
    mean = jnp.mean(h, axis=-1, keepdims=True)
    c = h - mean
    var = jnp.mean(c * c, axis=-1, keepdims=True)
    hn = c * jax.lax.rsqrt(var + eps)                        # rsqrt -> EUP
    hn = hn * g_ref[...].astype(jnp.float32) + beta_ref[...].astype(jnp.float32)

    # ----- decoder dense (MXU, bf16 operands, f32 accumulate) -----
    out = jax.lax.dot_general(hn.astype(jnp.bfloat16), w2_ref[...],
                              dimension_numbers=_CONTRACT_LAST,
                              preferred_element_type=jnp.float32)
    out = out + b2_ref[...].astype(jnp.float32)
    o_ref[...] = out.astype(o_ref.dtype)


def _vmem_limit_bytes():
    """~75% of this generation's per-core VMEM (64 MiB v7x, 128 MiB v5e/v6e)."""
    try:
        cap = int(pltpu.get_tpu_info().vmem_capacity_bytes)
    except Exception:
        cap = 64 * 1024 * 1024          # conservative fallback (v7x-sized)
    return cap * 3 // 4


def _const_spec(shape, use_buffered):
    """BlockSpec for a grid-invariant, VMEM-resident operand."""
    index_map = lambda i: (0,) * len(shape)
    if use_buffered:
        # Fetched once (constant index_map): single buffer instead of the
        # default double buffer -> halves resident-weight VMEM.
        return pl.BlockSpec(shape, index_map, pipeline_mode=pl.Buffered(1))
    return pl.BlockSpec(shape, index_map)


def bert_image_prediction_head(x, w_t, b_t, gamma, beta, w_d, b_d,
                               *, eps=1e-12, row_tile=512):
    """BertImagePredictionHead forward.

    x:     (..., H)
    w_t:   (H, H)   transform.dense.weight   (PyTorch (out, in) layout)
    b_t:   (H,)     transform.dense.bias
    gamma: (H,)     transform.LayerNorm.weight
    beta:  (H,)     transform.LayerNorm.bias
    w_d:   (T, H)   decoder.weight            (PyTorch (out, in) layout)
    b_d:   (T,)     decoder.bias
    returns (..., T)
    """
    orig_shape = x.shape
    H = orig_shape[-1]
    T = w_d.shape[0]
    Tp = _round_up(T, 128)            # lane-dense output stores (no vst.msk)

    x2 = x.reshape(-1, H)
    rows = x2.shape[0]
    out_dtype = x.dtype

    # bf16 weights (MXU-native dtype), kept in PyTorch (out, in) layout so no
    # transpose is materialized.  Ideally cast/pad once outside the hot path;
    # done here so the script is self-contained.
    w1 = w_t.astype(jnp.bfloat16)                             # (H, H)
    w2 = w_d.astype(jnp.bfloat16)                             # (T, H)
    b2 = b_d
    if Tp != T:
        w2 = jnp.pad(w2, ((0, Tp - T), (0, 0)))               # zero cols -> sliced off
        b2 = jnp.pad(b2, (0, Tp - T))
    b1 = b_t.reshape(1, H)
    g = gamma.reshape(1, H)
    bt = beta.reshape(1, H)
    b2 = b2.reshape(1, Tp)

    # ---- generation-aware row-tile selection (VMEM budget & megacore) ----
    vmem_limit = _vmem_limit_bytes()
    x_bytes = x2.dtype.itemsize
    o_bytes = jnp.dtype(out_dtype).itemsize
    # Conservative: assume double-buffered weights (correct even if Buffered(1)
    # is unavailable) plus headroom for Mosaic internal scratch.
    w_footprint = 2 * ((H * H + Tp * H) * 2 + 3 * H * 4 + Tp * 4)
    per_row = 2 * (H * x_bytes + Tp * o_bytes)     # double-buffered in/out tiles
    avail = max(vmem_limit - w_footprint - 2 * 1024 * 1024, per_row * 8)
    tile_cap = max(8, (avail // per_row) // 8 * 8)

    if rows <= 8:
        tile = rows                                # single exact block
    else:
        tile = int(min(row_tile, tile_cap, _round_up(rows, 8)))
        # Ensure >=2 grid steps so both v7x TensorCores get work ("parallel").
        if pl.cdiv(rows, tile) < 2:
            tile = int(_round_up(pl.cdiv(rows, 2), 8))
        if tile >= 256:
            tile = tile // 128 * 128               # MXU-friendly multiples
    grid = (pl.cdiv(rows, tile),)

    cost = pl.CostEstimate(
        flops=2 * rows * H * (H + Tp),
        transcendentals=rows * H,
        bytes_accessed=(rows * H * x_bytes + (H * H + Tp * H) * 2
                        + (3 * H + Tp) * 4 + rows * Tp * o_bytes))

    kernel = functools.partial(_head_kernel, eps=eps)

    # TODO(synk): for very large target_size (>~4k) add a second grid axis
    # over Tp instead of keeping W_d fully VMEM-resident.
    def _run(use_buffered):
        return pl.pallas_call(
            kernel,
            out_shape=jax.ShapeDtypeStruct((rows, Tp), out_dtype),
            grid_spec=pltpu.PrefetchScalarGridSpec(
                num_scalar_prefetch=0,
                grid=grid,
                in_specs=[
                    pl.BlockSpec((tile, H), lambda i: (i, 0)),   # x row tile
                    _const_spec((H, H), use_buffered),           # W_t (out,in)
                    _const_spec((1, H), use_buffered),           # b_t
                    _const_spec((1, H), use_buffered),           # gamma
                    _const_spec((1, H), use_buffered),           # beta
                    _const_spec((Tp, H), use_buffered),          # W_d (out,in), padded
                    _const_spec((1, Tp), use_buffered),          # b_d (padded)
                ],
                out_specs=pl.BlockSpec((tile, Tp), lambda i: (i, 0)),
            ),
            compiler_params=pltpu.CompilerParams(
                dimension_semantics=("parallel",),               # megacore on v7x
                vmem_limit_bytes=vmem_limit,
            ),
            cost_estimate=cost,
        )(x2, w1, b1, g, bt, w2, b2)

    try:
        out = _run(True)
    except Exception:
        # pl.Buffered(1) unsupported on this jax version -> default buffering.
        out = _run(False)

    if Tp != T:
        out = out[:, :T]
    return out.reshape(orig_shape[:-1] + (T,))


if __name__ == "__main__":
    batch, seq, hidden, target = 2, 8, 32, 64
    key = jax.random.PRNGKey(0)
    kx, k1, k2, k3, k4, k5, k6 = jax.random.split(key, 7)

    x = jax.random.normal(kx, (batch, seq, hidden), dtype=jnp.float32)
    w_t = 0.02 * jax.random.normal(k1, (hidden, hidden), dtype=jnp.float32)
    b_t = 0.02 * jax.random.normal(k2, (hidden,), dtype=jnp.float32)
    gamma = 1.0 + 0.1 * jax.random.normal(k3, (hidden,), dtype=jnp.float32)
    beta = 0.1 * jax.random.normal(k4, (hidden,), dtype=jnp.float32)
    w_d = 0.02 * jax.random.normal(k5, (target, hidden), dtype=jnp.float32)
    b_d = 0.02 * jax.random.normal(k6, (target,), dtype=jnp.float32)

    y = bert_image_prediction_head(x, w_t, b_t, gamma, beta, w_d, b_d,
                                   eps=1e-12)
    jax.block_until_ready(y)

    # Pure-JAX reference with the original module's math (exact erf GELU,
    # TF-style LayerNorm with eps inside sqrt, PyTorch Linear layout), in
    # full f32 precision.  The kernel deliberately uses bf16 MXU operands,
    # so compare with a bf16-appropriate tolerance.
    hp = jax.lax.Precision.HIGHEST
    h = jnp.einsum("bsh,oh->bso", x, w_t, precision=hp) + b_t
    h = 0.5 * h * (1.0 + jax.scipy.special.erf(h / jnp.sqrt(2.0)))
    u = jnp.mean(h, axis=-1, keepdims=True)
    s = jnp.mean((h - u) ** 2, axis=-1, keepdims=True)
    h = gamma * ((h - u) / jnp.sqrt(s + 1e-12)) + beta
    ref = jnp.einsum("bsh,th->bst", h, w_d, precision=hp) + b_d

    assert y.shape == ref.shape, (y.shape, ref.shape)
    max_diff = jnp.max(jnp.abs(y - ref))
    assert jnp.allclose(y, ref, atol=2e-2, rtol=2e-2), (
        f"mismatch vs reference, max diff {max_diff}")

    print("KERNEL_OK")
</pallas_src>

<mosaic_0001>
module attributes {stable_mosaic.version = 11 : i64} {
  func.func @_head_kernel(%arg0: i32, %arg1: memref<8x32xf32, #tpu.memory_space<vmem>>, %arg2: memref<32x32xbf16, #tpu.memory_space<vmem>>, %arg3: memref<1x32xf32, #tpu.memory_space<vmem>>, %arg4: memref<1x32xf32, #tpu.memory_space<vmem>>, %arg5: memref<1x32xf32, #tpu.memory_space<vmem>>, %arg6: memref<128x32xbf16, #tpu.memory_space<vmem>>, %arg7: memref<1x128xf32, #tpu.memory_space<vmem>>, %arg8: memref<8x128xf32, #tpu.memory_space<vmem>>) attributes {dimension_semantics = [#tpu.dimension_semantics<parallel>], iteration_bounds = array<i64: 2>, scalar_prefetch = 0 : i64, scratch_operands = 0 : i64, tpu.core_type = #tpu.core_type<tc>, window_params = [{transform_indices = @transform_0, window_bounds = array<i64: 8, 32>}, {pipeline_mode = #tpu.pipeline_mode<synchronous>, transform_indices = @transform_1, window_bounds = array<i64: 32, 32>}, {pipeline_mode = #tpu.pipeline_mode<synchronous>, transform_indices = @transform_2, window_bounds = array<i64: 1, 32>}, {pipeline_mode = #tpu.pipeline_mode<synchronous>, transform_indices = @transform_3, window_bounds = array<i64: 1, 32>}, {pipeline_mode = #tpu.pipeline_mode<synchronous>, transform_indices = @transform_4, window_bounds = array<i64: 1, 32>}, {pipeline_mode = #tpu.pipeline_mode<synchronous>, transform_indices = @transform_5, window_bounds = array<i64: 128, 32>}, {pipeline_mode = #tpu.pipeline_mode<synchronous>, transform_indices = @transform_6, window_bounds = array<i64: 1, 128>}, {transform_indices = @transform_7, window_bounds = array<i64: 8, 128>}]} {
    %c0 = arith.constant 0 : index
    %c0_0 = arith.constant 0 : index
    %0 = vector.load %arg1[%c0, %c0_0] : memref<8x32xf32, #tpu.memory_space<vmem>>, vector<8x32xf32>
    %1 = arith.truncf %0 : vector<8x32xf32> to vector<8x32xbf16>
    %c0_1 = arith.constant 0 : index
    %c0_2 = arith.constant 0 : index
    %2 = vector.load %arg2[%c0_1, %c0_2] : memref<32x32xbf16, #tpu.memory_space<vmem>>, vector<32x32xbf16>
    %cst = arith.constant dense<0.000000e+00> : vector<8x32xf32>
    %3 = tpu.matmul %1, %2, %cst {dimension_numbers = #tpu.dot_dimension_numbers<[1], [1], [0], [0], [0, 0, 1, 0], [], []>} : vector<8x32xbf16>, vector<32x32xbf16>, vector<8x32xf32> -> vector<8x32xf32>
    %c0_3 = arith.constant 0 : index
    %c0_4 = arith.constant 0 : index
    %4 = vector.load %arg3[%c0_3, %c0_4] : memref<1x32xf32, #tpu.memory_space<vmem>>, vector<1x32xf32>
    %5 = vector.broadcast %4 : vector<1x32xf32> to vector<8x32xf32>
    %6 = arith.addf %3, %5 : vector<8x32xf32>
    %cst_5 = arith.constant 5.000000e-01 : f32
    %7 = vector.broadcast %cst_5 : f32 to vector<8x32xf32>
    %8 = arith.mulf %7, %6 : vector<8x32xf32>
    %cst_6 = arith.constant 0.707106769 : f32
    %9 = vector.broadcast %cst_6 : f32 to vector<8x32xf32>
    %10 = arith.mulf %6, %9 : vector<8x32xf32>
    %11 = math.absf %10 : vector<8x32xf32>
    %cst_7 = arith.constant 0.327591091 : f32
    %12 = vector.broadcast %cst_7 : f32 to vector<8x32xf32>
    %13 = arith.mulf %12, %11 : vector<8x32xf32>
    %cst_8 = arith.constant 1.000000e+00 : f32
    %14 = vector.broadcast %cst_8 : f32 to vector<8x32xf32>
    %15 = arith.addf %14, %13 : vector<8x32xf32>
    %cst_9 = arith.constant 1.000000e+00 : f32
    %16 = vector.broadcast %cst_9 : f32 to vector<8x32xf32>
    %17 = arith.divf %16, %15 : vector<8x32xf32>
    %cst_10 = arith.constant 1.06140542 : f32
    %18 = vector.broadcast %cst_10 : f32 to vector<8x32xf32>
    %19 = arith.mulf %18, %17 : vector<8x32xf32>
    %cst_11 = arith.constant -1.45315206 : f32
    %20 = vector.broadcast %cst_11 : f32 to vector<8x32xf32>
    %21 = arith.addf %19, %20 : vector<8x32xf32>
    %22 = arith.mulf %21, %17 : vector<8x32xf32>
    %cst_12 = arith.constant 1.42141378 : f32
    %23 = vector.broadcast %cst_12 : f32 to vector<8x32xf32>
    %24 = arith.addf %22, %23 : vector<8x32xf32>
    %25 = arith.mulf %24, %17 : vector<8x32xf32>
    %cst_13 = arith.constant -0.284496725 : f32
    %26 = vector.broadcast %cst_13 : f32 to vector<8x32xf32>
    %27 = arith.addf %25, %26 : vector<8x32xf32>
    %28 = arith.mulf %27, %17 : vector<8x32xf32>
    %cst_14 = arith.constant 0.254829586 : f32
    %29 = vector.broadcast %cst_14 : f32 to vector<8x32xf32>
    %30 = arith.addf %28, %29 : vector<8x32xf32>
    %31 = arith.mulf %30, %17 : vector<8x32xf32>
    %cst_15 = arith.constant 0.000000e+00 : f32
    %32 = vector.broadcast %cst_15 : f32 to vector<8x32xf32>
    %33 = arith.subf %32, %11 : vector<8x32xf32>
    %34 = arith.mulf %33, %11 : vector<8x32xf32>
    %35 = math.exp %34 : vector<8x32xf32>
    %36 = arith.mulf %31, %35 : vector<8x32xf32>
    %cst_16 = arith.constant 1.000000e+00 : f32
    %37 = vector.broadcast %cst_16 : f32 to vector<8x32xf32>
    %38 = arith.subf %37, %36 : vector<8x32xf32>
    %cst_17 = arith.constant 0.000000e+00 : f32
    %39 = vector.broadcast %cst_17 : f32 to vector<8x32xf32>
    %40 = arith.cmpf oge, %10, %39 : vector<8x32xf32>
    %cst_18 = arith.constant 0.000000e+00 : f32
    %41 = vector.broadcast %cst_18 : f32 to vector<8x32xf32>
    %42 = arith.subf %41, %38 : vector<8x32xf32>
    %43 = arith.select %40, %38, %42 : vector<8x32xi1>, vector<8x32xf32>
    %cst_19 = arith.constant 1.000000e+00 : f32
    %44 = vector.broadcast %cst_19 : f32 to vector<8x32xf32>
    %45 = arith.addf %44, %43 : vector<8x32xf32>
    %46 = arith.mulf %8, %45 : vector<8x32xf32>
    %cst_20 = arith.constant dense<0.000000e+00> : vector<8xf32>
    %47 = vector.multi_reduction <add>, %46, %cst_20 [1] : vector<8x32xf32> to vector<8xf32>
    %48 = vector.shape_cast %47 : vector<8xf32> to vector<8x1xf32>
    %cst_21 = arith.constant 3.200000e+01 : f32
    %49 = vector.broadcast %cst_21 : f32 to vector<8x1xf32>
    %50 = arith.divf %48, %49 : vector<8x1xf32>
    %51 = vector.broadcast %50 : vector<8x1xf32> to vector<8x32xf32>
    %52 = arith.subf %46, %51 : vector<8x32xf32>
    %53 = arith.mulf %52, %52 : vector<8x32xf32>
    %cst_22 = arith.constant dense<0.000000e+00> : vector<8xf32>
    %54 = vector.multi_reduction <add>, %53, %cst_22 [1] : vector<8x32xf32> to vector<8xf32>
    %55 = vector.shape_cast %54 : vector<8xf32> to vector<8x1xf32>
    %cst_23 = arith.constant 3.200000e+01 : f32
    %56 = vector.broadcast %cst_23 : f32 to vector<8x1xf32>
    %57 = arith.divf %55, %56 : vector<8x1xf32>
    %cst_24 = arith.constant 9.99999996E-13 : f32
    %58 = vector.broadcast %cst_24 : f32 to vector<8x1xf32>
    %59 = arith.addf %57, %58 : vector<8x1xf32>
    %60 = math.rsqrt %59 : vector<8x1xf32>
    %61 = vector.broadcast %60 : vector<8x1xf32> to vector<8x32xf32>
    %62 = arith.mulf %52, %61 : vector<8x32xf32>
    %c0_25 = arith.constant 0 : index
    %c0_26 = arith.constant 0 : index
    %63 = vector.load %arg4[%c0_25, %c0_26] : memref<1x32xf32, #tpu.memory_space<vmem>>, vector<1x32xf32>
    %64 = vector.broadcast %63 : vector<1x32xf32> to vector<8x32xf32>
    %65 = arith.mulf %62, %64 : vector<8x32xf32>
    %c0_27 = arith.constant 0 : index
    %c0_28 = arith.constant 0 : index
    %66 = vector.load %arg5[%c0_27, %c0_28] : memref<1x32xf32, #tpu.memory_space<vmem>>, vector<1x32xf32>
    %67 = vector.broadcast %66 : vector<1x32xf32> to vector<8x32xf32>
    %68 = arith.addf %65, %67 : vector<8x32xf32>
    %69 = arith.truncf %68 : vector<8x32xf32> to vector<8x32xbf16>
    %c0_29 = arith.constant 0 : index
    %c0_30 = arith.constant 0 : index
    %70 = vector.load %arg6[%c0_29, %c0_30] : memref<128x32xbf16, #tpu.memory_space<vmem>>, vector<128x32xbf16>
    %cst_31 = arith.constant dense<0.000000e+00> : vector<8x128xf32>
    %71 = tpu.matmul %69, %70, %cst_31 {dimension_numbers = #tpu.dot_dimension_numbers<[1], [1], [0], [0], [0, 0, 1, 0], [], []>} : vector<8x32xbf16>, vector<128x32xbf16>, vector<8x128xf32> -> vector<8x128xf32>
    %c0_32 = arith.constant 0 : index
    %c0_33 = arith.constant 0 : index
    %72 = vector.load %arg7[%c0_32, %c0_33] : memref<1x128xf32, #tpu.memory_space<vmem>>, vector<1x128xf32>
    %73 = vector.broadcast %72 : vector<1x128xf32> to vector<8x128xf32>
    %74 = arith.addf %71, %73 : vector<8x128xf32>
    %c0_34 = arith.constant 0 : index
    %c0_35 = arith.constant 0 : index
    %75 = vector.load %arg8[%c0_34, %c0_35] : memref<8x128xf32, #tpu.memory_space<vmem>>, vector<8x128xf32>
    tpu.vector_store %arg8[%c0_34, %c0_35], %74 {strides = array<i32>} : memref<8x128xf32, #tpu.memory_space<vmem>>, vector<8x128xf32>,
    return
  }
  func.func @transform_0(%arg0: i32) -> (i32, i32) {
    %c0_i32 = arith.constant 0 : i32
    %c0_i32_0 = arith.constant 0 : i32
    return %arg0, %c0_i32 : i32, i32
  }
  func.func @transform_1(%arg0: i32) -> (i32, i32) {
    %c0_i32 = arith.constant 0 : i32
    %c0_i32_0 = arith.constant 0 : i32
    %c0_i32_1 = arith.constant 0 : i32
    return %c0_i32, %c0_i32_0 : i32, i32
  }
  func.func @transform_2(%arg0: i32) -> (i32, i32) {
    %c0_i32 = arith.constant 0 : i32
    %c0_i32_0 = arith.constant 0 : i32
    %c0_i32_1 = arith.constant 0 : i32
    return %c0_i32, %c0_i32_0 : i32, i32
  }
  func.func @transform_3(%arg0: i32) -> (i32, i32) {
    %c0_i32 = arith.constant 0 : i32
    %c0_i32_0 = arith.constant 0 : i32
    %c0_i32_1 = arith.constant 0 : i32
    return %c0_i32, %c0_i32_0 : i32, i32
  }
  func.func @transform_4(%arg0: i32) -> (i32, i32) {
    %c0_i32 = arith.constant 0 : i32
    %c0_i32_0 = arith.constant 0 : i32
    %c0_i32_1 = arith.constant 0 : i32
    return %c0_i32, %c0_i32_0 : i32, i32
  }
  func.func @transform_5(%arg0: i32) -> (i32, i32) {
    %c0_i32 = arith.constant 0 : i32
    %c0_i32_0 = arith.constant 0 : i32
    %c0_i32_1 = arith.constant 0 : i32
    return %c0_i32, %c0_i32_0 : i32, i32
  }
  func.func @transform_6(%arg0: i32) -> (i32, i32) {
    %c0_i32 = arith.constant 0 : i32
    %c0_i32_0 = arith.constant 0 : i32
    %c0_i32_1 = arith.constant 0 : i32
    return %c0_i32, %c0_i32_0 : i32, i32
  }
  func.func @transform_7(%arg0: i32) -> (i32, i32) {
    %c0_i32 = arith.constant 0 : i32
    %c0_i32_0 = arith.constant 0 : i32
    return %arg0, %c0_i32 : i32, i32
  }
}

module attributes {stable_mosaic.version = 11 : i64} {
  func.func @_head_kernel(%arg0: i32, %arg1: memref<8x32xf32, #tpu.memory_space<vmem>>, %arg2: memref<32x32xbf16, #tpu.memory_space<vmem>>, %arg3: memref<1x32xf32, #tpu.memory_space<vmem>>, %arg4: memref<1x32xf32, #tpu.memory_space<vmem>>, %arg5: memref<1x32xf32, #tpu.memory_space<vmem>>, %arg6: memref<128x32xbf16, #tpu.memory_space<vmem>>, %arg7: memref<1x128xf32, #tpu.memory_space<vmem>>, %arg8: memref<8x128xf32, #tpu.memory_space<vmem>>) attributes {dimension_semantics = [#tpu.dimension_semantics<parallel>], iteration_bounds = array<i64: 2>, scalar_prefetch = 0 : i64, scratch_operands = 0 : i64, tpu.core_type = #tpu.core_type<tc>, window_params = [{transform_indices = @transform_0, window_bounds = array<i64: 8, 32>}, {pipeline_mode = #tpu.pipeline_mode<synchronous>, transform_indices = @transform_1, window_bounds = array<i64: 32, 32>}, {pipeline_mode = #tpu.pipeline_mode<synchronous>, transform_indices = @transform_2, window_bounds = array<i64: 1, 32>}, {pipeline_mode = #tpu.pipeline_mode<synchronous>, transform_indices = @transform_3, window_bounds = array<i64: 1, 32>}, {pipeline_mode = #tpu.pipeline_mode<synchronous>, transform_indices = @transform_4, window_bounds = array<i64: 1, 32>}, {pipeline_mode = #tpu.pipeline_mode<synchronous>, transform_indices = @transform_5, window_bounds = array<i64: 128, 32>}, {pipeline_mode = #tpu.pipeline_mode<synchronous>, transform_indices = @transform_6, window_bounds = array<i64: 1, 128>}, {transform_indices = @transform_7, window_bounds = array<i64: 8, 128>}]} {
    %c0 = arith.constant 0 : index
    %c0_0 = arith.constant 0 : index
    %0 = vector.load %arg1[%c0, %c0_0] : memref<8x32xf32, #tpu.memory_space<vmem>>, vector<8x32xf32>
    %1 = arith.truncf %0 : vector<8x32xf32> to vector<8x32xbf16>
    %c0_1 = arith.constant 0 : index
    %c0_2 = arith.constant 0 : index
    %2 = vector.load %arg2[%c0_1, %c0_2] : memref<32x32xbf16, #tpu.memory_space<vmem>>, vector<32x32xbf16>
    %cst = arith.constant dense<0.000000e+00> : vector<8x32xf32>
    %3 = tpu.matmul %1, %2, %cst {dimension_numbers = #tpu.dot_dimension_numbers<[1], [1], [0], [0], [0, 0, 1, 0], [], []>} : vector<8x32xbf16>, vector<32x32xbf16>, vector<8x32xf32> -> vector<8x32xf32>
    %c0_3 = arith.constant 0 : index
    %c0_4 = arith.constant 0 : index
    %4 = vector.load %arg3[%c0_3, %c0_4] : memref<1x32xf32, #tpu.memory_space<vmem>>, vector<1x32xf32>
    %5 = vector.broadcast %4 : vector<1x32xf32> to vector<8x32xf32>
    %6 = arith.addf %3, %5 : vector<8x32xf32>
    %cst_5 = arith.constant 5.000000e-01 : f32
    %7 = vector.broadcast %cst_5 : f32 to vector<8x32xf32>
    %8 = arith.mulf %7, %6 : vector<8x32xf32>
    %cst_6 = arith.constant 0.707106769 : f32
    %9 = vector.broadcast %cst_6 : f32 to vector<8x32xf32>
    %10 = arith.mulf %6, %9 : vector<8x32xf32>
    %11 = math.absf %10 : vector<8x32xf32>
    %cst_7 = arith.constant 0.327591091 : f32
    %12 = vector.broadcast %cst_7 : f32 to vector<8x32xf32>
    %13 = arith.mulf %12, %11 : vector<8x32xf32>
    %cst_8 = arith.constant 1.000000e+00 : f32
    %14 = vector.broadcast %cst_8 : f32 to vector<8x32xf32>
    %15 = arith.addf %14, %13 : vector<8x32xf32>
    %cst_9 = arith.constant 1.000000e+00 : f32
    %16 = vector.broadcast %cst_9 : f32 to vector<8x32xf32>
    %17 = arith.divf %16, %15 : vector<8x32xf32>
    %cst_10 = arith.constant 1.06140542 : f32
    %18 = vector.broadcast %cst_10 : f32 to vector<8x32xf32>
    %19 = arith.mulf %18, %17 : vector<8x32xf32>
    %cst_11 = arith.constant -1.45315206 : f32
    %20 = vector.broadcast %cst_11 : f32 to vector<8x32xf32>
    %21 = arith.addf %19, %20 : vector<8x32xf32>
    %22 = arith.mulf %21, %17 : vector<8x32xf32>
    %cst_12 = arith.constant 1.42141378 : f32
    %23 = vector.broadcast %cst_12 : f32 to vector<8x32xf32>
    %24 = arith.addf %22, %23 : vector<8x32xf32>
    %25 = arith.mulf %24, %17 : vector<8x32xf32>
    %cst_13 = arith.constant -0.284496725 : f32
    %26 = vector.broadcast %cst_13 : f32 to vector<8x32xf32>
    %27 = arith.addf %25, %26 : vector<8x32xf32>
    %28 = arith.mulf %27, %17 : vector<8x32xf32>
    %cst_14 = arith.constant 0.254829586 : f32
    %29 = vector.broadcast %cst_14 : f32 to vector<8x32xf32>
    %30 = arith.addf %28, %29 : vector<8x32xf32>
    %31 = arith.mulf %30, %17 : vector<8x32xf32>
    %cst_15 = arith.constant 0.000000e+00 : f32
    %32 = vector.broadcast %cst_15 : f32 to vector<8x32xf32>
    %33 = arith.subf %32, %11 : vector<8x32xf32>
    %34 = arith.mulf %33, %11 : vector<8x32xf32>
    %35 = math.exp %34 : vector<8x32xf32>
    %36 = arith.mulf %31, %35 : vector<8x32xf32>
    %cst_16 = arith.constant 1.000000e+00 : f32
    %37 = vector.broadcast %cst_16 : f32 to vector<8x32xf32>
    %38 = arith.subf %37, %36 : vector<8x32xf32>
    %cst_17 = arith.constant 0.000000e+00 : f32
    %39 = vector.broadcast %cst_17 : f32 to vector<8x32xf32>
    %40 = arith.cmpf oge, %10, %39 : vector<8x32xf32>
    %cst_18 = arith.constant 0.000000e+00 : f32
    %41 = vector.broadcast %cst_18 : f32 to vector<8x32xf32>
    %42 = arith.subf %41, %38 : vector<8x32xf32>
    %43 = arith.select %40, %38, %42 : vector<8x32xi1>, vector<8x32xf32>
    %cst_19 = arith.constant 1.000000e+00 : f32
    %44 = vector.broadcast %cst_19 : f32 to vector<8x32xf32>
    %45 = arith.addf %44, %43 : vector<8x32xf32>
    %46 = arith.mulf %8, %45 : vector<8x32xf32>
    %cst_20 = arith.constant dense<0.000000e+00> : vector<8xf32>
    %47 = vector.multi_reduction <add>, %46, %cst_20 [1] : vector<8x32xf32> to vector<8xf32>
    %48 = vector.shape_cast %47 : vector<8xf32> to vector<8x1xf32>
    %cst_21 = arith.constant 3.200000e+01 : f32
    %49 = vector.broadcast %cst_21 : f32 to vector<8x1xf32>
    %50 = arith.divf %48, %49 : vector<8x1xf32>
    %51 = vector.broadcast %50 : vector<8x1xf32> to vector<8x32xf32>
    %52 = arith.subf %46, %51 : vector<8x32xf32>
    %53 = arith.mulf %52, %52 : vector<8x32xf32>
    %cst_22 = arith.constant dense<0.000000e+00> : vector<8xf32>
    %54 = vector.multi_reduction <add>, %53, %cst_22 [1] : vector<8x32xf32> to vector<8xf32>
    %55 = vector.shape_cast %54 : vector<8xf32> to vector<8x1xf32>
    %cst_23 = arith.constant 3.200000e+01 : f32
    %56 = vector.broadcast %cst_23 : f32 to vector<8x1xf32>
    %57 = arith.divf %55, %56 : vector<8x1xf32>
    %cst_24 = arith.constant 9.99999996E-13 : f32
    %58 = vector.broadcast %cst_24 : f32 to vector<8x1xf32>
    %59 = arith.addf %57, %58 : vector<8x1xf32>
    %60 = math.rsqrt %59 : vector<8x1xf32>
    %61 = vector.broadcast %60 : vector<8x1xf32> to vector<8x32xf32>
    %62 = arith.mulf %52, %61 : vector<8x32xf32>
    %c0_25 = arith.constant 0 : index
    %c0_26 = arith.constant 0 : index
    %63 = vector.load %arg4[%c0_25, %c0_26] : memref<1x32xf32, #tpu.memory_space<vmem>>, vector<1x32xf32>
    %64 = vector.broadcast %63 : vector<1x32xf32> to vector<8x32xf32>
    %65 = arith.mulf %62, %64 : vector<8x32xf32>
    %c0_27 = arith.constant 0 : index
    %c0_28 = arith.constant 0 : index
    %66 = vector.load %arg5[%c0_27, %c0_28] : memref<1x32xf32, #tpu.memory_space<vmem>>, vector<1x32xf32>
    %67 = vector.broadcast %66 : vector<1x32xf32> to vector<8x32xf32>
    %68 = arith.addf %65, %67 : vector<8x32xf32>
    %69 = arith.truncf %68 : vector<8x32xf32> to vector<8x32xbf16>
    %c0_29 = arith.constant 0 : index
    %c0_30 = arith.constant 0 : index
    %70 = vector.load %arg6[%c0_29, %c0_30] : memref<128x32xbf16, #tpu.memory_space<vmem>>, vector<128x32xbf16>
    %cst_31 = arith.constant dense<0.000000e+00> : vector<8x128xf32>
    %71 = tpu.matmul %69, %70, %cst_31 {dimension_numbers = #tpu.dot_dimension_numbers<[1], [1], [0], [0], [0, 0, 1, 0], [], []>} : vector<8x32xbf16>, vector<128x32xbf16>, vector<8x128xf32> -> vector<8x128xf32>
    %c0_32 = arith.constant 0 : index
    %c0_33 = arith.constant 0 : index
    %72 = vector.load %arg7[%c0_32, %c0_33] : memref<1x128xf32, #tpu.memory_space<vmem>>, vector<1x128xf32>
    %73 = vector.broadcast %72 : vector<1x128xf32> to vector<8x128xf32>
    %74 = arith.addf %71, %73 : vector<8x128xf32>
    %c0_34 = arith.constant 0 : index
    %c0_35 = arith.constant 0 : index
    %75 = vector.load %arg8[%c0_34, %c0_35] : memref<8x128xf32, #tpu.memory_space<vmem>>, vector<8x128xf32>
    tpu.vector_store %arg8[%c0_34, %c0_35], %74 {strides = array<i32>} : memref<8x128xf32, #tpu.memory_space<vmem>>, vector<8x128xf32>,
    return
  }
  func.func @transform_0(%arg0: i32) -> (i32, i32) {
    %c0_i32 = arith.constant 0 : i32
    %c0_i32_0 = arith.constant 0 : i32
    return %arg0, %c0_i32 : i32, i32
  }
  func.func @transform_1(%arg0: i32) -> (i32, i32) {
    %c0_i32 = arith.constant 0 : i32
    %c0_i32_0 = arith.constant 0 : i32
    %c0_i32_1 = arith.constant 0 : i32
    return %c0_i32, %c0_i32_0 : i32, i32
  }
  func.func @transform_2(%arg0: i32) -> (i32, i32) {
    %c0_i32 = arith.constant 0 : i32
    %c0_i32_0 = arith.constant 0 : i32
    %c0_i32_1 = arith.constant 0 : i32
    return %c0_i32, %c0_i32_0 : i32, i32
  }
  func.func @transform_3(%arg0: i32) -> (i32, i32) {
    %c0_i32 = arith.constant 0 : i32
    %c0_i32_0 = arith.constant 0 : i32
    %c0_i32_1 = arith.constant 0 : i32
    return %c0_i32, %c0_i32_0 : i32, i32
  }
  func.func @transform_4(%arg0: i32) -> (i32, i32) {
    %c0_i32 = arith.constant 0 : i32
    %c0_i32_0 = arith.constant 0 : i32
    %c0_i32_1 = arith.constant 0 : i32
    return %c0_i32, %c0_i32_0 : i32, i32
  }
  func.func @transform_5(%arg0: i32) -> (i32, i32) {
    %c0_i32 = arith.constant 0 : i32
    %c0_i32_0 = arith.constant 0 : i32
    %c0_i32_1 = arith.constant 0 : i32
    return %c0_i32, %c0_i32_0 : i32, i32
  }
  func.func @transform_6(%arg0: i32) -> (i32, i32) {
    %c0_i32 = arith.constant 0 : i32
    %c0_i32_0 = arith.constant 0 : i32
    %c0_i32_1 = arith.constant 0 : i32
    return %c0_i32, %c0_i32_0 : i32, i32
  }
  func.func @transform_7(%arg0: i32) -> (i32, i32) {
    %c0_i32 = arith.constant 0 : i32
    %c0_i32_0 = arith.constant 0 : i32
    return %arg0, %c0_i32 : i32, i32
  }
}

</mosaic_0001>

<llo_original>
// kernel: tpu_custom_call.1
$region0: #{tpu_custom_call.1}
  #allocation0 [shape = 'u32[]', space=smem, size = 0x4, offset = 0x4, fixed_abs, tag = 'smem constant byte address 0x4 - core index']
  #allocation1 [shape = 'u32[72,128]{1,0:T(1,128)}', space=vmem, size = 0x9000, scoped, tag = 'internal scratch']
  %s0 = inlined_call_operand.vmem [shape: f32[16,32], index: 0, kind: input, shape index: {}]
  %s1 = inlined_call_operand.vmem [shape: bf16[32,32], index: 1, kind: input, shape index: {}]
  %s2 = inlined_call_operand.vmem [shape: f32[1,32], index: 2, kind: input, shape index: {}]
  %s3 = inlined_call_operand.vmem [shape: f32[1,32], index: 3, kind: input, shape index: {}]
  %s4 = inlined_call_operand.vmem [shape: f32[1,32], index: 4, kind: input, shape index: {}]
  %s5 = inlined_call_operand.vmem [shape: bf16[128,32], index: 5, kind: input, shape index: {}]
  %s6 = inlined_call_operand.vmem [shape: f32[1,128], index: 6, kind: input, shape index: {}]
  %s7 = inlined_call_operand.hbm [shape: f32[16,128], index: 7, kind: output, shape index: {}]
  %s8 = sld [smem:[#allocation0]]
  $region61: #{tpu_custom_call.1} parent=0
    _
  %s10 = ssub.s32 1, %s8
  %s11 = scalar_select 0, %s10, %s8
  $region1: #{tpu_custom_call.1} parent=0
    #allocation2 [shape = 'u8[8192]{0}', space=vmem, size = 0x2000, scoped, tag = 'output window, operand 0']
    #allocation3 [shape = 's32[2]{0}', space=sflag, size = 0x8, scoped, tag = 'scoped memory for tpu_custom_call.1']
    %12 = vsyncpa [#allocation3], 0
    %s13 = scalar_lea.sflag [#allocation3], 1
    %14 = vsyncpa %s13, 0
    loop: start=0, step=1, limit=4
    $region2: #{tpu_custom_call.1} parent=1 // loop_pre_header
      _
    $region3: #{tpu_custom_call.1} parent=1 // loop_header
      %s16 = sphi 0, %s20
      %p17 = scmp.ge.s32.totalorder %s16, 4
      %s26 = sphi 0, %s28
      %s29 = sphi 0, %s26
      %s30 = sphi 0, %s29
      %s46 = sphi 0, %s30
      %s50 = sphi 0, %s50
      %s52 = sphi 0, %s50
      %s53 = sphi 0, %s52
      %s67 = sphi 0, %s53
      %s71 = sphi 0, %s71
      %s73 = sphi 0, %s71
      %s74 = sphi 0, %s73
      %s88 = sphi 0, %s74
      %s92 = sphi 0, %s92
      %s94 = sphi 0, %s92
      %s95 = sphi 0, %s94
      %s109 = sphi 0, %s95
      %s113 = sphi 0, %s113
      %s115 = sphi 0, %s113
      %s116 = sphi 0, %s115
      %s130 = sphi 0, %s116
      %s134 = sphi 0, %s134
      %s136 = sphi 0, %s134
      %s137 = sphi 0, %s136
      %s151 = sphi 0, %s137
      %s155 = sphi 0, %s155
      %s157 = sphi 0, %s155
      %s158 = sphi 0, %s157
      %s172 = sphi 0, %s158
      %s178 = sphi 0, %s180
      %s181 = sphi 0, %s178
      %s182 = sphi 0, %s181
      %s198 = sphi 0, %s182
    $region4: #{tpu_custom_call.1} parent=1 // loop_header_branch
      %19 = sbr.rel (%p17) target = $region8
    $region5: #{tpu_custom_call.1} parent=1 // loop_body
      %s21 = ssub.s32 %s16, 1
      %s22 = ssub.s32 %s16, 2
      %s23 = sadd.s32 %s16, 1
      %s24 = ssub.s32 %s16, %s23
      %p25 = scmp.eq.s32.totalorder %s24, 0
      %s27 = sadd.s32 %s26, 1
      %s28 = scalar_select %p25, %s26, %s27
      %p31 = pneg %p25
      %p32 = scmp.eq.s32.totalorder %s16, 1
      %p33 = por %p31, %p32
      %p34 = scmp.ne.s32.totalorder %s26, %s29
      %p35 = scmp.eq.s32.totalorder %s16, 0
      %p36 = por %p34, %p35
      %p37 = scmp.ne.s32.totalorder %s26, %s29
      %p38 = scmp.eq.s32.totalorder %s21, 1
      %p39 = por %p37, %p38
      %p40 = scmp.ne.s32.totalorder %s29, %s30
      %p41 = scmp.eq.s32.totalorder %s21, 0
      %p42 = por %p40, %p41
      %p43 = scmp.ne.s32.totalorder %s29, %s30
      %p44 = scmp.eq.s32.totalorder %s22, 1
      %p45 = por %p43, %p44
      %p47 = scmp.ne.s32.totalorder %s30, %s46
      %p48 = scmp.eq.s32.totalorder %s22, 0
      %p49 = por %p47, %p48
      %s51 = sadd.s32 %s50, 1
      %p54 = scmp.eq.s32.totalorder %s16, 1
      %p55 = scmp.ne.s32.totalorder %s50, %s52
      %p56 = scmp.eq.s32.totalorder %s16, 0
      %p57 = por %p55, %p56
      %p58 = scmp.ne.s32.totalorder %s50, %s52
      %p59 = scmp.eq.s32.totalorder %s21, 1
      %p60 = por %p58, %p59
      %p61 = scmp.ne.s32.totalorder %s52, %s53
      %p62 = scmp.eq.s32.totalorder %s21, 0
      %p63 = por %p61, %p62
      %p64 = scmp.ne.s32.totalorder %s52, %s53
      %p65 = scmp.eq.s32.totalorder %s22, 1
      %p66 = por %p64, %p65
      %p68 = scmp.ne.s32.totalorder %s53, %s67
      %p69 = scmp.eq.s32.totalorder %s22, 0
      %p70 = por %p68, %p69
      %s72 = sadd.s32 %s71, 1
      %p75 = scmp.eq.s32.totalorder %s16, 1
      %p76 = scmp.ne.s32.totalorder %s71, %s73
      %p77 = scmp.eq.s32.totalorder %s16, 0
      %p78 = por %p76, %p77
      %p79 = scmp.ne.s32.totalorder %s71, %s73
      %p80 = scmp.eq.s32.totalorder %s21, 1
      %p81 = por %p79, %p80
      %p82 = scmp.ne.s32.totalorder %s73, %s74
      %p83 = scmp.eq.s32.totalorder %s21, 0
      %p84 = por %p82, %p83
      %p85 = scmp.ne.s32.totalorder %s73, %s74
      %p86 = scmp.eq.s32.totalorder %s22, 1
      %p87 = por %p85, %p86
      %p89 = scmp.ne.s32.totalorder %s74, %s88
      %p90 = scmp.eq.s32.totalorder %s22, 0
      %p91 = por %p89, %p90
      %s93 = sadd.s32 %s92, 1
      %p96 = scmp.eq.s32.totalorder %s16, 1
      %p97 = scmp.ne.s32.totalorder %s92, %s94
      %p98 = scmp.eq.s32.totalorder %s16, 0
      %p99 = por %p97, %p98
      %p100 = scmp.ne.s32.totalorder %s92, %s94
      %p101 = scmp.eq.s32.totalorder %s21, 1
      %p102 = por %p100, %p101
      %p103 = scmp.ne.s32.totalorder %s94, %s95
      %p104 = scmp.eq.s32.totalorder %s21, 0
      %p105 = por %p103, %p104
      %p106 = scmp.ne.s32.totalorder %s94, %s95
      %p107 = scmp.eq.s32.totalorder %s22, 1
      %p108 = por %p106, %p107
      %p110 = scmp.ne.s32.totalorder %s95, %s109
      %p111 = scmp.eq.s32.totalorder %s22, 0
      %p112 = por %p110, %p111
      %s114 = sadd.s32 %s113, 1
      %p117 = scmp.eq.s32.totalorder %s16, 1
      %p118 = scmp.ne.s32.totalorder %s113, %s115
      %p119 = scmp.eq.s32.totalorder %s16, 0
      %p120 = por %p118, %p119
      %p121 = scmp.ne.s32.totalorder %s113, %s115
      %p122 = scmp.eq.s32.totalorder %s21, 1
      %p123 = por %p121, %p122
      %p124 = scmp.ne.s32.totalorder %s115, %s116
      %p125 = scmp.eq.s32.totalorder %s21, 0
      %p126 = por %p124, %p125
      %p127 = scmp.ne.s32.totalorder %s115, %s116
      %p128 = scmp.eq.s32.totalorder %s22, 1
      %p129 = por %p127, %p128
      %p131 = scmp.ne.s32.totalorder %s116, %s130
      %p132 = scmp.eq.s32.totalorder %s22, 0
      %p133 = por %p131, %p132
      %s135 = sadd.s32 %s134, 1
      %p138 = scmp.eq.s32.totalorder %s16, 1
      %p139 = scmp.ne.s32.totalorder %s134, %s136
      %p140 = scmp.eq.s32.totalorder %s16, 0
      %p141 = por %p139, %p140
      %p142 = scmp.ne.s32.totalorder %s134, %s136
      %p143 = scmp.eq.s32.totalorder %s21, 1
      %p144 = por %p142, %p143
      %p145 = scmp.ne.s32.totalorder %s136, %s137
      %p146 = scmp.eq.s32.totalorder %s21, 0
      %p147 = por %p145, %p146
      %p148 = scmp.ne.s32.totalorder %s136, %s137
      %p149 = scmp.eq.s32.totalorder %s22, 1
      %p150 = por %p148, %p149
      %p152 = scmp.ne.s32.totalorder %s137, %s151
      %p153 = scmp.eq.s32.totalorder %s22, 0
      %p154 = por %p152, %p153
      %s156 = sadd.s32 %s155, 1
      %p159 = scmp.eq.s32.totalorder %s16, 1
      %p160 = scmp.ne.s32.totalorder %s155, %s157
      %p161 = scmp.eq.s32.totalorder %s16, 0
      %p162 = por %p160, %p161
      %p163 = scmp.ne.s32.totalorder %s155, %s157
      %p164 = scmp.eq.s32.totalorder %s21, 1
      %p165 = por %p163, %p164
      %p166 = scmp.ne.s32.totalorder %s157, %s158
      %p167 = scmp.eq.s32.totalorder %s21, 0
      %p168 = por %p166, %p167
      %p169 = scmp.ne.s32.totalorder %s157, %s158
      %p170 = scmp.eq.s32.totalorder %s22, 1
      %p171 = por %p169, %p170
      %p173 = scmp.ne.s32.totalorder %s158, %s172
      %p174 = scmp.eq.s32.totalorder %s22, 0
      %p175 = por %p173, %p174
      %s176 = ssub.s32 %s16, %s23
      %p177 = scmp.eq.s32.totalorder %s176, 0
      %s179 = sadd.s32 %s178, 1
      %s180 = scalar_select %p177, %s178, %s179
      %p183 = pneg %p177
      %p184 = scmp.eq.s32.totalorder %s16, 1
      %p185 = por %p183, %p184
      %p186 = scmp.ne.s32.totalorder %s178, %s181
      %p187 = scmp.eq.s32.totalorder %s16, 0
      %p188 = por %p186, %p187
      %p189 = scmp.ne.s32.totalorder %s178, %s181
      %p190 = scmp.eq.s32.totalorder %s21, 1
      %p191 = por %p189, %p190
      %p192 = scmp.ne.s32.totalorder %s181, %s182
      %p193 = scmp.eq.s32.totalorder %s21, 0
      %p194 = por %p192, %p193
      %p195 = scmp.ne.s32.totalorder %s181, %s182
      %p196 = scmp.eq.s32.totalorder %s22, 1
      %p197 = por %p195, %p196
      %p199 = scmp.ne.s32.totalorder %s182, %s198
      %p200 = scmp.eq.s32.totalorder %s22, 0
      %p201 = por %p199, %p200
      %p202 = scmp.le.s32.totalorder 1, %s16
      %p203 = scmp.lt.s32.totalorder %s16, 3
      %p204 = pnand %p202, %p203
      %p205 = pneg %p204
      // Predicated region
      $region9: #{tpu_custom_call.1} parent=5 // pred_check
        _
      $region10: #{tpu_custom_call.1} parent=5 // pred_check_branch
        %207 = sbr.rel (%p204) target = $region12
      $region11: #{tpu_custom_call.1} parent=5 // pred_region
        %s208 = ssub.s32 %s16, 1
        // Predicated region
        $region13: #{tpu_custom_call.1} parent=11 // pred_check
          %p209 = pneg %p63
        $region14: #{tpu_custom_call.1} parent=11 // pred_check_branch
          %211 = sbr.rel (%p209) target = $region16
        $region15: #{tpu_custom_call.1} parent=11 // pred_region
          _
        $region16: #{tpu_custom_call.1} parent=11 // pred_fallthru
          _
        // Predicated region
        $region17: #{tpu_custom_call.1} parent=11 // pred_check
          %p212 = pneg %p84
        $region18: #{tpu_custom_call.1} parent=11 // pred_check_branch
          %214 = sbr.rel (%p212) target = $region20
        $region19: #{tpu_custom_call.1} parent=11 // pred_region
          _
        $region20: #{tpu_custom_call.1} parent=11 // pred_fallthru
          _
        // Predicated region
        $region21: #{tpu_custom_call.1} parent=11 // pred_check
          %p215 = pneg %p105
        $region22: #{tpu_custom_call.1} parent=11 // pred_check_branch
          %217 = sbr.rel (%p215) target = $region24
        $region23: #{tpu_custom_call.1} parent=11 // pred_region
          _
        $region24: #{tpu_custom_call.1} parent=11 // pred_fallthru
          _
        // Predicated region
        $region25: #{tpu_custom_call.1} parent=11 // pred_check
          %p218 = pneg %p126
        $region26: #{tpu_custom_call.1} parent=11 // pred_check_branch
          %220 = sbr.rel (%p218) target = $region28
        $region27: #{tpu_custom_call.1} parent=11 // pred_region
          _
        $region28: #{tpu_custom_call.1} parent=11 // pred_fallthru
          _
        // Predicated region
        $region29: #{tpu_custom_call.1} parent=11 // pred_check
          %p221 = pneg %p147
        $region30: #{tpu_custom_call.1} parent=11 // pred_check_branch
          %223 = sbr.rel (%p221) target = $region32
        $region31: #{tpu_custom_call.1} parent=11 // pred_region
          _
        $region32: #{tpu_custom_call.1} parent=11 // pred_fallthru
          _
        // Predicated region
        $region33: #{tpu_custom_call.1} parent=11 // pred_check
          %p224 = pneg %p168
        $region34: #{tpu_custom_call.1} parent=11 // pred_check_branch
          %226 = sbr.rel (%p224) target = $region36
        $region35: #{tpu_custom_call.1} parent=11 // pred_region
          _
        $region36: #{tpu_custom_call.1} parent=11 // pred_fallthru
          _
      $region12: #{tpu_custom_call.1} parent=5 // pred_fallthru
        _
      %p227 = scmp.lt.s32.totalorder %s16, 2
      // Predicated region
      $region37: #{tpu_custom_call.1} parent=5 // pred_check
        %p228 = pneg %p227
      $region38: #{tpu_custom_call.1} parent=5 // pred_check_branch
        %230 = sbr.rel (%p228) target = $region40
      $region39: #{tpu_custom_call.1} parent=5 // pred_region
        // Predicated region
        $region41: #{tpu_custom_call.1} parent=39 // pred_check
          %p231 = pneg %p36
        $region42: #{tpu_custom_call.1} parent=39 // pred_check_branch
          %233 = sbr.rel (%p231) target = $region44
        $region43: #{tpu_custom_call.1} parent=39 // pred_region
          %p234 = scmp.lt.s32.totalorder %s16, 1
          %s235 = scalar_select %p234, %s16, 1
          %s236 = smul.addr %s235, 8
          %s237 = scalar_lea.vmem %s0, %s236
        $region44: #{tpu_custom_call.1} parent=39 // pred_fallthru
          _
      $region40: #{tpu_custom_call.1} parent=5 // pred_fallthru
        _
      %p238 = scmp.le.s32.totalorder 1, %s16
      %p239 = scmp.lt.s32.totalorder %s16, 3
      %p240 = pnand %p238, %p239
      %p241 = pneg %p240
      // Predicated region
      $region45: #{tpu_custom_call.1} parent=5 // pred_check
        _
      $region46: #{tpu_custom_call.1} parent=5 // pred_check_branch
        %243 = sbr.rel (%p240) target = $region48
      $region47: #{tpu_custom_call.1} parent=5 // pred_region
        %s244 = ssub.s32 %s16, 1
        %p245 = scmp.lt.s32.totalorder %s21, 1
        %s246 = scalar_select %p245, %s21, 1
        %s247 = smul.addr %s246, 8
        %s248 = scalar_lea.vmem %s0, %s247
        %p249 = pneg %p42
        %p250 = pneg %p39
        %p251 = pneg %p63
        %p252 = pneg %p60
        %p253 = pneg %p84
        %p254 = pneg %p81
        %p255 = pneg %p105
        %p256 = pneg %p102
        %p257 = pneg %p126
        %p258 = pneg %p123
        %p259 = pneg %p147
        %p260 = pneg %p144
        %p261 = pneg %p168
        %p262 = pneg %p165
        %p263 = pneg %p194
        %p264 = pneg %p191
        %s265 = sand.u32 %s181, 1
        %s266 = scalar_lea.sflag [#allocation3], %s265
        %s267 = sand.u32 %s181, 1
        %s268 = smul.addr %s267, 8
        %s269 = scalar_lea.vmem [#allocation2], %s268
        %p270 = scmp.lt.s32.totalorder %s21, 1
        %s271 = scalar_select %p270, %s21, 1
        %s272 = smul.addr %s271, 8
        %s273 = scalar_lea.vmem %s0, %s272
        %v275 = vld [vmem:[%s273] sm:$0xff]
        %v276 = vpack.c.bf16 %v275, %v275
        %v277 = vld [vmem:[%s1] sm:$0xf]
        %v278 = vld [vmem:[%s1 + $0x4] sm:$0xf]
        %v279 = vld [vmem:[%s1 + $0x8] sm:$0xf]
        %v280 = vld [vmem:[%s1 + $0xc] sm:$0xf]
        %v281 = vld [vmem:[%s2] sm:$0x1]
        %v283 = vperm.slane %v281, 0
        %v289 = vunpack.c.l.b16 %v277
        %v290 = vunpack.c.l.b16 %v278
        %v291 = vunpack.c.l.b16 %v279
        %v292 = vunpack.c.l.b16 %v280
        %v293 = vpack.c.b16 %v290, %v289
        %v294 = vpack.c.b16 %v292, %v291
        %vm295 = vcmask 261120
        %v297 = vsel %vm295, %v276, 0
        %v300 = vsel %vm295, %v293, 0
        %v303 = vsel %vm295, %v294, 0
        %305 = vmatpush.bf16.xpose.msra.mxu0 0
        %306 = vmatpush.bf16.xpose.msra.mxu0 0
        %307 = vmatpush.bf16.xpose.msra.mxu0 0
        %308 = vmatpush.bf16.xpose.msra.mxu0 0
        %309 = vmatpush.bf16.xpose.msra.mxu0 0
        %310 = vmatpush.bf16.xpose.msra.mxu0 0
        %311 = vmatpush.bf16.xpose.msra.mxu0 %v303
        %312 = vmatpush.bf16.xpose.msra.mxu0 %v300
        %313 = vmatmul.bf16.gmra.mxu0 %v297
        %v314 = vpop.f32.mrf.mxu0
        %v315 = vadd.f32 %v283, %v314
        %v316 = vpop.f32.mrf.mxu0
        %317 = vdwg.mxu0
        %v318 = vmul.f32 %v315, 0.5
        %v319 = vmul.f32 %v315, 0.70710677
        %v320 = vand.u32 2147483647, %v319
        %v321 = vmul.f32 %v320, 0.3275911
        %v322 = vadd.f32 %v321, 1.0
        %v323 = vrcp.pop %v322
        %v324 = vmul.f32 %v322, %v323
        %v325 = vsub.f32 1.0, %v324
        %v326 = vmul.f32 %v323, %v325
        %v327 = vadd.f32 %v323, %v326
        %vm328 = vweird.f32 %v322
        %vm329 = vweird.f32 %v323
        %vm330 = vmor %vm328, %vm329
        %v331 = vsel %vm330, %v323, %v327
        %v332 = vand.u32 2147483647, %v322
        %vm333 = vcmp.eq.f32.partialorder %v332, 8.507059e+37
        %v334 = vand.u32 %v322, 2147483648
        %v335 = vor.u32 1.1754944e-38, %v334
        %v336 = vsel %vm333, %v335, %v331
        %v337 = vmul.f32 1.0, %v336
        %v338 = vmul.f32 %v337, 1.0614054
        %v339 = vadd.f32 %v338, -1.4531521
        %v340 = vmul.f32 %v339, %v337
        %v341 = vadd.f32 %v340, 1.4214138
        %v342 = vmul.f32 %v341, %v337
        %v343 = vadd.f32 %v342, -0.28449672
        %v344 = vmul.f32 %v343, %v337
        %v345 = vadd.f32 %v344, 0.2548296
        %v346 = vmul.f32 %v345, %v337
        %v347 = vsub.f32 0.0, %v320
        %v348 = vmul.f32 %v347, %v320
        %v349 = vmul.f32 %v348, 1.442695
        %v350 = vpow.pop %v349
        %v351 = vmul.f32 %v346, %v350
        %v352 = vsub.f32 1.0, %v351
        %vm353 = vcmp.ge.f32.partialorder %v319, 0.0
        %v354 = vsub.f32 0.0, %v352
        %v355 = vsel %vm353, %v352, %v354
        %v356 = vadd.f32 %v355, 1.0
        %v357 = vmul.f32 %v318, %v356
        %v358 = vsel %vm295, %v357, 0.0
        %359 = vadd.xlane.f32.xlu0 %v358
        %v360 = vpop.xlane.xlu0 %359
        %v361 = vrcp.pop 32.0
        %v362 = vmul.f32 32.0, %v361
        %v363 = vsub.f32 1.0, %v362
        %v364 = vmul.f32 %v361, %v363
        %v365 = vadd.f32 %v361, %v364
        %vm366 = vweird.f32 %v361
        %v367 = vsel %vm366, %v361, %v365
        %v368 = vmul.f32 %v360, %v367
        %v369 = vsub.f32 %v357, %v368
        %v370 = vmul.f32 %v369, %v369
        %v371 = vsel %vm295, %v370, 0.0
        %372 = vadd.xlane.f32.xlu0 %v371
        %v373 = vpop.xlane.xlu0 %372
        %v374 = vmul.f32 %v373, %v367
        %v375 = vadd.f32 %v374, 1e-12
        %v376 = vrsqrt.pop %v375
        %v377 = vmul.f32 %v376, %v375
        %v378 = vmul.f32 %v377, %v376
        %v379 = vmul.f32 0.5, %v378
        %v380 = vsub.f32 1.5, %v379
        %v381 = vmul.f32 %v376, %v380
        %vm382 = vweird.f32 %v375
        %vm383 = vweird.f32 %v376
        %vm384 = vmor %vm382, %vm383
        %v385 = vsel %vm384, %v376, %v381
        %v386 = vmul.f32 %v369, %v385
        %v387 = vld [vmem:[%s3] sm:$0x1]
        %v389 = vperm.slane %v387, 0
        %v391 = vmul.f32 %v386, %v389
        %v392 = vld [vmem:[%s4] sm:$0x1]
        %v394 = vperm.slane %v392, 0
        %v396 = vadd.f32 %v391, %v394
        %v397 = vpack.c.bf16 %v396, %v396
        %v398 = vld [vmem:[%s5] sm:$0xf]
        %v399 = vld [vmem:[%s5 + $0x4] sm:$0xf]
        %v400 = vld [vmem:[%s5 + $0x8] sm:$0xf]
        %v401 = vld [vmem:[%s5 + $0xc] sm:$0xf]
        %v402 = vld [vmem:[%s5 + $0x10] sm:$0xf]
        %v403 = vld [vmem:[%s5 + $0x14] sm:$0xf]
        %v404 = vld [vmem:[%s5 + $0x18] sm:$0xf]
        %v405 = vld [vmem:[%s5 + $0x1c] sm:$0xf]
        %v406 = vld [vmem:[%s5 + $0x20] sm:$0xf]
        %v407 = vld [vmem:[%s5 + $0x24] sm:$0xf]
        %v408 = vld [vmem:[%s5 + $0x28] sm:$0xf]
        %v409 = vld [vmem:[%s5 + $0x2c] sm:$0xf]
        %v410 = vld [vmem:[%s5 + $0x30] sm:$0xf]
        %v411 = vld [vmem:[%s5 + $0x34] sm:$0xf]
        %v412 = vld [vmem:[%s5 + $0x38] sm:$0xf]
        %v413 = vld [vmem:[%s5 + $0x3c] sm:$0xf]
        %v414 = vld [vmem:[%s6] sm:$0x1]
        %v416 = vperm.slane %v414, 0
        %v434 = vunpack.c.l.b16 %v398
        %v435 = vunpack.c.l.b16 %v399
        %v436 = vunpack.c.l.b16 %v400
        %v437 = vunpack.c.l.b16 %v401
        %v438 = vunpack.c.l.b16 %v402
        %v439 = vunpack.c.l.b16 %v403
        %v440 = vunpack.c.l.b16 %v404
        %v441 = vunpack.c.l.b16 %v405
        %v442 = vunpack.c.l.b16 %v406
        %v443 = vunpack.c.l.b16 %v407
        %v444 = vunpack.c.l.b16 %v408
        %v445 = vunpack.c.l.b16 %v409
        %v446 = vunpack.c.l.b16 %v410
        %v447 = vunpack.c.l.b16 %v411
        %v448 = vunpack.c.l.b16 %v412
        %v449 = vunpack.c.l.b16 %v413
        %v450 = vpack.c.b16 %v435, %v434
        %v451 = vpack.c.b16 %v437, %v436
        %v452 = vpack.c.b16 %v439, %v438
        %v453 = vpack.c.b16 %v441, %v440
        %v454 = vpack.c.b16 %v443, %v442
        %v455 = vpack.c.b16 %v445, %v444
        %v456 = vpack.c.b16 %v447, %v446
        %v457 = vpack.c.b16 %v449, %v448
        %v459 = vsel %vm295, %v397, 0
        %v462 = vsel %vm295, %v450, 0
        %v465 = vsel %vm295, %v451, 0
        %v468 = vsel %vm295, %v452, 0
        %v471 = vsel %vm295, %v453, 0
        %v474 = vsel %vm295, %v454, 0
        %v477 = vsel %vm295, %v455, 0
        %v480 = vsel %vm295, %v456, 0
        %v483 = vsel %vm295, %v457, 0
        %485 = vmatpush.bf16.xpose.msra.mxu0 %v483
        %486 = vmatpush.bf16.xpose.msra.mxu0 %v480
        %487 = vmatpush.bf16.xpose.msra.mxu0 %v477
        %488 = vmatpush.bf16.xpose.msra.mxu0 %v474
        %489 = vmatpush.bf16.xpose.msra.mxu0 %v471
        %490 = vmatpush.bf16.xpose.msra.mxu0 %v468
        %491 = vmatpush.bf16.xpose.msra.mxu0 %v465
        %492 = vmatpush.bf16.xpose.msra.mxu0 %v462
        %493 = vmatmul.bf16.gmra.mxu0 %v459
        %v494 = vpop.f32.mrf.mxu0
        %v495 = vadd.f32 %v416, %v494
        %v496 = vpop.f32.mrf.mxu0
        %497 = vdwg.mxu0
        %498 = vst [vmem:[%s269] sm:$0xff] %v495
        %s499 = sand.u32 %s181, 1
        %s500 = scalar_lea.sflag [#allocation3], %s499
        %s501 = sand.u32 %s181, 1
        %s502 = smul.addr %s501, 8
        %s503 = scalar_lea.vmem [#allocation2], %s502
        // Predicated region
        $region49: #{tpu_custom_call.1} parent=47 // pred_check
          %p504 = pneg %p191
        $region50: #{tpu_custom_call.1} parent=47 // pred_check_branch
          %506 = sbr.rel (%p504) target = $region52
        $region51: #{tpu_custom_call.1} parent=47 // pred_region
          %508 = vsyncadd %s500, 0
          %s509 = smul.addr %s21, 8
          %s510 = scalar_lea.hbm %s7, %s509
          %s512 = sshll.u32 %s503, 4
          %s513 = int_to_ptr.vmem [resolvable:$true] %s512
          %s514 = sshll.u32 %s510, 4
          %s515 = int_to_ptr.hbm [resolvable:$true] %s514
          %517 = dma.vmem_to_hbm [thread:$0]  %s513, 128, %s515, %s500
        $region52: #{tpu_custom_call.1} parent=47 // pred_fallthru
          _
      $region48: #{tpu_custom_call.1} parent=5 // pred_fallthru
        _
      %p518 = scmp.le.s32.totalorder 2, %s16
      // Predicated region
      $region53: #{tpu_custom_call.1} parent=5 // pred_check
        %p519 = pneg %p518
      $region54: #{tpu_custom_call.1} parent=5 // pred_check_branch
        %521 = sbr.rel (%p519) target = $region56
      $region55: #{tpu_custom_call.1} parent=5 // pred_region
        %s522 = ssub.s32 %s16, 2
        // Predicated region
        $region57: #{tpu_custom_call.1} parent=55 // pred_check
          %p523 = pneg %p197
        $region58: #{tpu_custom_call.1} parent=55 // pred_check_branch
          %525 = sbr.rel (%p523) target = $region60
        $region59: #{tpu_custom_call.1} parent=55 // pred_region
          %s526 = sand.u32 %s182, 1
          %s527 = scalar_lea.sflag [#allocation3], %s526
          %s528 = sand.u32 %s182, 1
          %s529 = smul.addr %s528, 8
          %s530 = scalar_lea.vmem [#allocation2], %s529
          %532 = dma.done %s527, 128
        $region60: #{tpu_custom_call.1} parent=55 // pred_fallthru
          _
      $region56: #{tpu_custom_call.1} parent=5 // pred_fallthru
        _
    $region6: #{tpu_custom_call.1} parent=1 // loop_footer
      %s20 = sadd.s32 1, %s16
    $region7: #{tpu_custom_call.1} parent=1 // loop_footer_branch
      %15 = sbr.rel target = $region3
    $region8: #{tpu_custom_call.1} parent=1 // loop_exit
      _
    %533 = vsyncpa [#allocation3], 1
    %s534 = scalar_lea.sflag [#allocation3], 1
    %535 = vsyncpa %s534, 1

// kernel: tpu_custom_call.1
$region0: #{tpu_custom_call.1}
  #allocation0 [shape = 'u32[]', space=smem, size = 0x4, offset = 0x4, fixed_abs, tag = 'smem constant byte address 0x4 - core index']
  #allocation1 [shape = 'u32[72,128]{1,0:T(1,128)}', space=vmem, size = 0x9000, scoped, tag = 'internal scratch']
  %s0 = inlined_call_operand.vmem [shape: f32[16,32], index: 0, kind: input, shape index: {}]
  %s1 = inlined_call_operand.vmem [shape: bf16[32,32], index: 1, kind: input, shape index: {}]
  %s2 = inlined_call_operand.vmem [shape: f32[1,32], index: 2, kind: input, shape index: {}]
  %s3 = inlined_call_operand.vmem [shape: f32[1,32], index: 3, kind: input, shape index: {}]
  %s4 = inlined_call_operand.vmem [shape: f32[1,32], index: 4, kind: input, shape index: {}]
  %s5 = inlined_call_operand.vmem [shape: bf16[128,32], index: 5, kind: input, shape index: {}]
  %s6 = inlined_call_operand.vmem [shape: f32[1,128], index: 6, kind: input, shape index: {}]
  %s7 = inlined_call_operand.hbm [shape: f32[16,128], index: 7, kind: output, shape index: {}]
  %s8 = sld [smem:[#allocation0]]
  $region61: #{tpu_custom_call.1} parent=0
    _
  %s10 = ssub.s32 1, %s8
  %s11 = scalar_select 0, %s10, %s8
  $region1: #{tpu_custom_call.1} parent=0
    #allocation2 [shape = 'u8[8192]{0}', space=vmem, size = 0x2000, scoped, tag = 'output window, operand 0']
    #allocation3 [shape = 's32[2]{0}', space=sflag, size = 0x8, scoped, tag = 'scoped memory for tpu_custom_call.1']
    %12 = vsyncpa [#allocation3], 0
    %s13 = scalar_lea.sflag [#allocation3], 1
    %14 = vsyncpa %s13, 0
    loop: start=0, step=1, limit=4
    $region2: #{tpu_custom_call.1} parent=1 // loop_pre_header
      _
    $region3: #{tpu_custom_call.1} parent=1 // loop_header
      %s16 = sphi 0, %s20
      %p17 = scmp.ge.s32.totalorder %s16, 4
      %s26 = sphi 0, %s28
      %s29 = sphi 0, %s26
      %s30 = sphi 0, %s29
      %s46 = sphi 0, %s30
      %s50 = sphi 0, %s50
      %s52 = sphi 0, %s50
      %s53 = sphi 0, %s52
      %s67 = sphi 0, %s53
      %s71 = sphi 0, %s71
      %s73 = sphi 0, %s71
      %s74 = sphi 0, %s73
      %s88 = sphi 0, %s74
      %s92 = sphi 0, %s92
      %s94 = sphi 0, %s92
      %s95 = sphi 0, %s94
      %s109 = sphi 0, %s95
      %s113 = sphi 0, %s113
      %s115 = sphi 0, %s113
      %s116 = sphi 0, %s115
      %s130 = sphi 0, %s116
      %s134 = sphi 0, %s134
      %s136 = sphi 0, %s134
      %s137 = sphi 0, %s136
      %s151 = sphi 0, %s137
      %s155 = sphi 0, %s155
      %s157 = sphi 0, %s155
      %s158 = sphi 0, %s157
      %s172 = sphi 0, %s158
      %s178 = sphi 0, %s180
      %s181 = sphi 0, %s178
      %s182 = sphi 0, %s181
      %s198 = sphi 0, %s182
    $region4: #{tpu_custom_call.1} parent=1 // loop_header_branch
      %19 = sbr.rel (%p17) target = $region8
    $region5: #{tpu_custom_call.1} parent=1 // loop_body
      %s21 = ssub.s32 %s16, 1
      %s22 = ssub.s32 %s16, 2
      %s23 = sadd.s32 %s16, 1
      %s24 = ssub.s32 %s16, %s23
      %p25 = scmp.eq.s32.totalorder %s24, 0
      %s27 = sadd.s32 %s26, 1
      %s28 = scalar_select %p25, %s26, %s27
      %p31 = pneg %p25
      %p32 = scmp.eq.s32.totalorder %s16, 1
      %p33 = por %p31, %p32
      %p34 = scmp.ne.s32.totalorder %s26, %s29
      %p35 = scmp.eq.s32.totalorder %s16, 0
      %p36 = por %p34, %p35
      %p37 = scmp.ne.s32.totalorder %s26, %s29
      %p38 = scmp.eq.s32.totalorder %s21, 1
      %p39 = por %p37, %p38
      %p40 = scmp.ne.s32.totalorder %s29, %s30
      %p41 = scmp.eq.s32.totalorder %s21, 0
      %p42 = por %p40, %p41
      %p43 = scmp.ne.s32.totalorder %s29, %s30
      %p44 = scmp.eq.s32.totalorder %s22, 1
      %p45 = por %p43, %p44
      %p47 = scmp.ne.s32.totalorder %s30, %s46
      %p48 = scmp.eq.s32.totalorder %s22, 0
      %p49 = por %p47, %p48
      %s51 = sadd.s32 %s50, 1
      %p54 = scmp.eq.s32.totalorder %s16, 1
      %p55 = scmp.ne.s32.totalorder %s50, %s52
      %p56 = scmp.eq.s32.totalorder %s16, 0
      %p57 = por %p55, %p56
      %p58 = scmp.ne.s32.totalorder %s50, %s52
      %p59 = scmp.eq.s32.totalorder %s21, 1
      %p60 = por %p58, %p59
      %p61 = scmp.ne.s32.totalorder %s52, %s53
      %p62 = scmp.eq.s32.totalorder %s21, 0
      %p63 = por %p61, %p62
      %p64 = scmp.ne.s32.totalorder %s52, %s53
      %p65 = scmp.eq.s32.totalorder %s22, 1
      %p66 = por %p64, %p65
      %p68 = scmp.ne.s32.totalorder %s53, %s67
      %p69 = scmp.eq.s32.totalorder %s22, 0
      %p70 = por %p68, %p69
      %s72 = sadd.s32 %s71, 1
      %p75 = scmp.eq.s32.totalorder %s16, 1
      %p76 = scmp.ne.s32.totalorder %s71, %s73
      %p77 = scmp.eq.s32.totalorder %s16, 0
      %p78 = por %p76, %p77
      %p79 = scmp.ne.s32.totalorder %s71, %s73
      %p80 = scmp.eq.s32.totalorder %s21, 1
      %p81 = por %p79, %p80
      %p82 = scmp.ne.s32.totalorder %s73, %s74
      %p83 = scmp.eq.s32.totalorder %s21, 0
      %p84 = por %p82, %p83
      %p85 = scmp.ne.s32.totalorder %s73, %s74
      %p86 = scmp.eq.s32.totalorder %s22, 1
      %p87 = por %p85, %p86
      %p89 = scmp.ne.s32.totalorder %s74, %s88
      %p90 = scmp.eq.s32.totalorder %s22, 0
      %p91 = por %p89, %p90
      %s93 = sadd.s32 %s92, 1
      %p96 = scmp.eq.s32.totalorder %s16, 1
      %p97 = scmp.ne.s32.totalorder %s92, %s94
      %p98 = scmp.eq.s32.totalorder %s16, 0
      %p99 = por %p97, %p98
      %p100 = scmp.ne.s32.totalorder %s92, %s94
      %p101 = scmp.eq.s32.totalorder %s21, 1
      %p102 = por %p100, %p101
      %p103 = scmp.ne.s32.totalorder %s94, %s95
      %p104 = scmp.eq.s32.totalorder %s21, 0
      %p105 = por %p103, %p104
      %p106 = scmp.ne.s32.totalorder %s94, %s95
      %p107 = scmp.eq.s32.totalorder %s22, 1
      %p108 = por %p106, %p107
      %p110 = scmp.ne.s32.totalorder %s95, %s109
      %p111 = scmp.eq.s32.totalorder %s22, 0
      %p112 = por %p110, %p111
      %s114 = sadd.s32 %s113, 1
      %p117 = scmp.eq.s32.totalorder %s16, 1
      %p118 = scmp.ne.s32.totalorder %s113, %s115
      %p119 = scmp.eq.s32.totalorder %s16, 0
      %p120 = por %p118, %p119
      %p121 = scmp.ne.s32.totalorder %s113, %s115
      %p122 = scmp.eq.s32.totalorder %s21, 1
      %p123 = por %p121, %p122
      %p124 = scmp.ne.s32.totalorder %s115, %s116
      %p125 = scmp.eq.s32.totalorder %s21, 0
      %p126 = por %p124, %p125
      %p127 = scmp.ne.s32.totalorder %s115, %s116
      %p128 = scmp.eq.s32.totalorder %s22, 1
      %p129 = por %p127, %p128
      %p131 = scmp.ne.s32.totalorder %s116, %s130
      %p132 = scmp.eq.s32.totalorder %s22, 0
      %p133 = por %p131, %p132
      %s135 = sadd.s32 %s134, 1
      %p138 = scmp.eq.s32.totalorder %s16, 1
      %p139 = scmp.ne.s32.totalorder %s134, %s136
      %p140 = scmp.eq.s32.totalorder %s16, 0
      %p141 = por %p139, %p140
      %p142 = scmp.ne.s32.totalorder %s134, %s136
      %p143 = scmp.eq.s32.totalorder %s21, 1
      %p144 = por %p142, %p143
      %p145 = scmp.ne.s32.totalorder %s136, %s137
      %p146 = scmp.eq.s32.totalorder %s21, 0
      %p147 = por %p145, %p146
      %p148 = scmp.ne.s32.totalorder %s136, %s137
      %p149 = scmp.eq.s32.totalorder %s22, 1
      %p150 = por %p148, %p149
      %p152 = scmp.ne.s32.totalorder %s137, %s151
      %p153 = scmp.eq.s32.totalorder %s22, 0
      %p154 = por %p152, %p153
      %s156 = sadd.s32 %s155, 1
      %p159 = scmp.eq.s32.totalorder %s16, 1
      %p160 = scmp.ne.s32.totalorder %s155, %s157
      %p161 = scmp.eq.s32.totalorder %s16, 0
      %p162 = por %p160, %p161
      %p163 = scmp.ne.s32.totalorder %s155, %s157
      %p164 = scmp.eq.s32.totalorder %s21, 1
      %p165 = por %p163, %p164
      %p166 = scmp.ne.s32.totalorder %s157, %s158
      %p167 = scmp.eq.s32.totalorder %s21, 0
      %p168 = por %p166, %p167
      %p169 = scmp.ne.s32.totalorder %s157, %s158
      %p170 = scmp.eq.s32.totalorder %s22, 1
      %p171 = por %p169, %p170
      %p173 = scmp.ne.s32.totalorder %s158, %s172
      %p174 = scmp.eq.s32.totalorder %s22, 0
      %p175 = por %p173, %p174
      %s176 = ssub.s32 %s16, %s23
      %p177 = scmp.eq.s32.totalorder %s176, 0
      %s179 = sadd.s32 %s178, 1
      %s180 = scalar_select %p177, %s178, %s179
      %p183 = pneg %p177
      %p184 = scmp.eq.s32.totalorder %s16, 1
      %p185 = por %p183, %p184
      %p186 = scmp.ne.s32.totalorder %s178, %s181
      %p187 = scmp.eq.s32.totalorder %s16, 0
      %p188 = por %p186, %p187
      %p189 = scmp.ne.s32.totalorder %s178, %s181
      %p190 = scmp.eq.s32.totalorder %s21, 1
      %p191 = por %p189, %p190
      %p192 = scmp.ne.s32.totalorder %s181, %s182
      %p193 = scmp.eq.s32.totalorder %s21, 0
      %p194 = por %p192, %p193
      %p195 = scmp.ne.s32.totalorder %s181, %s182
      %p196 = scmp.eq.s32.totalorder %s22, 1
      %p197 = por %p195, %p196
      %p199 = scmp.ne.s32.totalorder %s182, %s198
      %p200 = scmp.eq.s32.totalorder %s22, 0
      %p201 = por %p199, %p200
      %p202 = scmp.le.s32.totalorder 1, %s16
      %p203 = scmp.lt.s32.totalorder %s16, 3
      %p204 = pnand %p202, %p203
      %p205 = pneg %p204
      // Predicated region
      $region9: #{tpu_custom_call.1} parent=5 // pred_check
        _
      $region10: #{tpu_custom_call.1} parent=5 // pred_check_branch
        %207 = sbr.rel (%p204) target = $region12
      $region11: #{tpu_custom_call.1} parent=5 // pred_region
        %s208 = ssub.s32 %s16, 1
        // Predicated region
        $region13: #{tpu_custom_call.1} parent=11 // pred_check
          %p209 = pneg %p63
        $region14: #{tpu_custom_call.1} parent=11 // pred_check_branch
          %211 = sbr.rel (%p209) target = $region16
        $region15: #{tpu_custom_call.1} parent=11 // pred_region
          _
        $region16: #{tpu_custom_call.1} parent=11 // pred_fallthru
          _
        // Predicated region
        $region17: #{tpu_custom_call.1} parent=11 // pred_check
          %p212 = pneg %p84
        $region18: #{tpu_custom_call.1} parent=11 // pred_check_branch
          %214 = sbr.rel (%p212) target = $region20
        $region19: #{tpu_custom_call.1} parent=11 // pred_region
          _
        $region20: #{tpu_custom_call.1} parent=11 // pred_fallthru
          _
        // Predicated region
        $region21: #{tpu_custom_call.1} parent=11 // pred_check
          %p215 = pneg %p105
        $region22: #{tpu_custom_call.1} parent=11 // pred_check_branch
          %217 = sbr.rel (%p215) target = $region24
        $region23: #{tpu_custom_call.1} parent=11 // pred_region
          _
        $region24: #{tpu_custom_call.1} parent=11 // pred_fallthru
          _
        // Predicated region
        $region25: #{tpu_custom_call.1} parent=11 // pred_check
          %p218 = pneg %p126
        $region26: #{tpu_custom_call.1} parent=11 // pred_check_branch
          %220 = sbr.rel (%p218) target = $region28
        $region27: #{tpu_custom_call.1} parent=11 // pred_region
          _
        $region28: #{tpu_custom_call.1} parent=11 // pred_fallthru
          _
        // Predicated region
        $region29: #{tpu_custom_call.1} parent=11 // pred_check
          %p221 = pneg %p147
        $region30: #{tpu_custom_call.1} parent=11 // pred_check_branch
          %223 = sbr.rel (%p221) target = $region32
        $region31: #{tpu_custom_call.1} parent=11 // pred_region
          _
        $region32: #{tpu_custom_call.1} parent=11 // pred_fallthru
          _
        // Predicated region
        $region33: #{tpu_custom_call.1} parent=11 // pred_check
          %p224 = pneg %p168
        $region34: #{tpu_custom_call.1} parent=11 // pred_check_branch
          %226 = sbr.rel (%p224) target = $region36
        $region35: #{tpu_custom_call.1} parent=11 // pred_region
          _
        $region36: #{tpu_custom_call.1} parent=11 // pred_fallthru
          _
      $region12: #{tpu_custom_call.1} parent=5 // pred_fallthru
        _
      %p227 = scmp.lt.s32.totalorder %s16, 2
      // Predicated region
      $region37: #{tpu_custom_call.1} parent=5 // pred_check
        %p228 = pneg %p227
      $region38: #{tpu_custom_call.1} parent=5 // pred_check_branch
        %230 = sbr.rel (%p228) target = $region40
      $region39: #{tpu_custom_call.1} parent=5 // pred_region
        // Predicated region
        $region41: #{tpu_custom_call.1} parent=39 // pred_check
          %p231 = pneg %p36
        $region42: #{tpu_custom_call.1} parent=39 // pred_check_branch
          %233 = sbr.rel (%p231) target = $region44
        $region43: #{tpu_custom_call.1} parent=39 // pred_region
          %p234 = scmp.lt.s32.totalorder %s16, 1
          %s235 = scalar_select %p234, %s16, 1
          %s236 = smul.addr %s235, 8
          %s237 = scalar_lea.vmem %s0, %s236
        $region44: #{tpu_custom_call.1} parent=39 // pred_fallthru
          _
      $region40: #{tpu_custom_call.1} parent=5 // pred_fallthru
        _
      %p238 = scmp.le.s32.totalorder 1, %s16
      %p239 = scmp.lt.s32.totalorder %s16, 3
      %p240 = pnand %p238, %p239
      %p241 = pneg %p240
      // Predicated region
      $region45: #{tpu_custom_call.1} parent=5 // pred_check
        _
      $region46: #{tpu_custom_call.1} parent=5 // pred_check_branch
        %243 = sbr.rel (%p240) target = $region48
      $region47: #{tpu_custom_call.1} parent=5 // pred_region
        %s244 = ssub.s32 %s16, 1
        %p245 = scmp.lt.s32.totalorder %s21, 1
        %s246 = scalar_select %p245, %s21, 1
        %s247 = smul.addr %s246, 8
        %s248 = scalar_lea.vmem %s0, %s247
        %p249 = pneg %p42
        %p250 = pneg %p39
        %p251 = pneg %p63
        %p252 = pneg %p60
        %p253 = pneg %p84
        %p254 = pneg %p81
        %p255 = pneg %p105
        %p256 = pneg %p102
        %p257 = pneg %p126
        %p258 = pneg %p123
        %p259 = pneg %p147
        %p260 = pneg %p144
        %p261 = pneg %p168
        %p262 = pneg %p165
        %p263 = pneg %p194
        %p264 = pneg %p191
        %s265 = sand.u32 %s181, 1
        %s266 = scalar_lea.sflag [#allocation3], %s265
        %s267 = sand.u32 %s181, 1
        %s268 = smul.addr %s267, 8
        %s269 = scalar_lea.vmem [#allocation2], %s268
        %p270 = scmp.lt.s32.totalorder %s21, 1
        %s271 = scalar_select %p270, %s21, 1
        %s272 = smul.addr %s271, 8
        %s273 = scalar_lea.vmem %s0, %s272
        %v275 = vld [vmem:[%s273] sm:$0xff]
        %v276 = vpack.c.bf16 %v275, %v275
        %v277 = vld [vmem:[%s1] sm:$0xf]
        %v278 = vld [vmem:[%s1 + $0x4] sm:$0xf]
        %v279 = vld [vmem:[%s1 + $0x8] sm:$0xf]
        %v280 = vld [vmem:[%s1 + $0xc] sm:$0xf]
        %v281 = vld [vmem:[%s2] sm:$0x1]
        %v283 = vperm.slane %v281, 0
        %v289 = vunpack.c.l.b16 %v277
        %v290 = vunpack.c.l.b16 %v278
        %v291 = vunpack.c.l.b16 %v279
        %v292 = vunpack.c.l.b16 %v280
        %v293 = vpack.c.b16 %v290, %v289
        %v294 = vpack.c.b16 %v292, %v291
        %vm295 = vcmask 261120
        %v297 = vsel %vm295, %v276, 0
        %v300 = vsel %vm295, %v293, 0
        %v303 = vsel %vm295, %v294, 0
        %305 = vmatpush.bf16.xpose.msra.mxu0 0
        %306 = vmatpush.bf16.xpose.msra.mxu0 0
        %307 = vmatpush.bf16.xpose.msra.mxu0 0
        %308 = vmatpush.bf16.xpose.msra.mxu0 0
        %309 = vmatpush.bf16.xpose.msra.mxu0 0
        %310 = vmatpush.bf16.xpose.msra.mxu0 0
        %311 = vmatpush.bf16.xpose.msra.mxu0 %v303
        %312 = vmatpush.bf16.xpose.msra.mxu0 %v300
        %313 = vmatmul.bf16.gmra.mxu0 %v297
        %v314 = vpop.f32.mrf.mxu0
        %v315 = vadd.f32 %v283, %v314
        %v316 = vpop.f32.mrf.mxu0
        %317 = vdwg.mxu0
        %v318 = vmul.f32 %v315, 0.5
        %v319 = vmul.f32 %v315, 0.70710677
        %v320 = vand.u32 2147483647, %v319
        %v321 = vmul.f32 %v320, 0.3275911
        %v322 = vadd.f32 %v321, 1.0
        %v323 = vrcp.pop %v322
        %v324 = vmul.f32 %v322, %v323
        %v325 = vsub.f32 1.0, %v324
        %v326 = vmul.f32 %v323, %v325
        %v327 = vadd.f32 %v323, %v326
        %vm328 = vweird.f32 %v322
        %vm329 = vweird.f32 %v323
        %vm330 = vmor %vm328, %vm329
        %v331 = vsel %vm330, %v323, %v327
        %v332 = vand.u32 2147483647, %v322
        %vm333 = vcmp.eq.f32.partialorder %v332, 8.507059e+37
        %v334 = vand.u32 %v322, 2147483648
        %v335 = vor.u32 1.1754944e-38, %v334
        %v336 = vsel %vm333, %v335, %v331
        %v337 = vmul.f32 1.0, %v336
        %v338 = vmul.f32 %v337, 1.0614054
        %v339 = vadd.f32 %v338, -1.4531521
        %v340 = vmul.f32 %v339, %v337
        %v341 = vadd.f32 %v340, 1.4214138
        %v342 = vmul.f32 %v341, %v337
        %v343 = vadd.f32 %v342, -0.28449672
        %v344 = vmul.f32 %v343, %v337
        %v345 = vadd.f32 %v344, 0.2548296
        %v346 = vmul.f32 %v345, %v337
        %v347 = vsub.f32 0.0, %v320
        %v348 = vmul.f32 %v347, %v320
        %v349 = vmul.f32 %v348, 1.442695
        %v350 = vpow.pop %v349
        %v351 = vmul.f32 %v346, %v350
        %v352 = vsub.f32 1.0, %v351
        %vm353 = vcmp.ge.f32.partialorder %v319, 0.0
        %v354 = vsub.f32 0.0, %v352
        %v355 = vsel %vm353, %v352, %v354
        %v356 = vadd.f32 %v355, 1.0
        %v357 = vmul.f32 %v318, %v356
        %v358 = vsel %vm295, %v357, 0.0
        %359 = vadd.xlane.f32.xlu0 %v358
        %v360 = vpop.xlane.xlu0 %359
        %v361 = vrcp.pop 32.0
        %v362 = vmul.f32 32.0, %v361
        %v363 = vsub.f32 1.0, %v362
        %v364 = vmul.f32 %v361, %v363
        %v365 = vadd.f32 %v361, %v364
        %vm366 = vweird.f32 %v361
        %v367 = vsel %vm366, %v361, %v365
        %v368 = vmul.f32 %v360, %v367
        %v369 = vsub.f32 %v357, %v368
        %v370 = vmul.f32 %v369, %v369
        %v371 = vsel %vm295, %v370, 0.0
        %372 = vadd.xlane.f32.xlu0 %v371
        %v373 = vpop.xlane.xlu0 %372
        %v374 = vmul.f32 %v373, %v367
        %v375 = vadd.f32 %v374, 1e-12
        %v376 = vrsqrt.pop %v375
        %v377 = vmul.f32 %v376, %v375
        %v378 = vmul.f32 %v377, %v376
        %v379 = vmul.f32 0.5, %v378
        %v380 = vsub.f32 1.5, %v379
        %v381 = vmul.f32 %v376, %v380
        %vm382 = vweird.f32 %v375
        %vm383 = vweird.f32 %v376
        %vm384 = vmor %vm382, %vm383
        %v385 = vsel %vm384, %v376, %v381
        %v386 = vmul.f32 %v369, %v385
        %v387 = vld [vmem:[%s3] sm:$0x1]
        %v389 = vperm.slane %v387, 0
        %v391 = vmul.f32 %v386, %v389
        %v392 = vld [vmem:[%s4] sm:$0x1]
        %v394 = vperm.slane %v392, 0
        %v396 = vadd.f32 %v391, %v394
        %v397 = vpack.c.bf16 %v396, %v396
        %v398 = vld [vmem:[%s5] sm:$0xf]
        %v399 = vld [vmem:[%s5 + $0x4] sm:$0xf]
        %v400 = vld [vmem:[%s5 + $0x8] sm:$0xf]
        %v401 = vld [vmem:[%s5 + $0xc] sm:$0xf]
        %v402 = vld [vmem:[%s5 + $0x10] sm:$0xf]
        %v403 = vld [vmem:[%s5 + $0x14] sm:$0xf]
        %v404 = vld [vmem:[%s5 + $0x18] sm:$0xf]
        %v405 = vld [vmem:[%s5 + $0x1c] sm:$0xf]
        %v406 = vld [vmem:[%s5 + $0x20] sm:$0xf]
        %v407 = vld [vmem:[%s5 + $0x24] sm:$0xf]
        %v408 = vld [vmem:[%s5 + $0x28] sm:$0xf]
        %v409 = vld [vmem:[%s5 + $0x2c] sm:$0xf]
        %v410 = vld [vmem:[%s5 + $0x30] sm:$0xf]
        %v411 = vld [vmem:[%s5 + $0x34] sm:$0xf]
        %v412 = vld [vmem:[%s5 + $0x38] sm:$0xf]
        %v413 = vld [vmem:[%s5 + $0x3c] sm:$0xf]
        %v414 = vld [vmem:[%s6] sm:$0x1]
        %v416 = vperm.slane %v414, 0
        %v434 = vunpack.c.l.b16 %v398
        %v435 = vunpack.c.l.b16 %v399
        %v436 = vunpack.c.l.b16 %v400
        %v437 = vunpack.c.l.b16 %v401
        %v438 = vunpack.c.l.b16 %v402
        %v439 = vunpack.c.l.b16 %v403
        %v440 = vunpack.c.l.b16 %v404
        %v441 = vunpack.c.l.b16 %v405
        %v442 = vunpack.c.l.b16 %v406
        %v443 = vunpack.c.l.b16 %v407
        %v444 = vunpack.c.l.b16 %v408
        %v445 = vunpack.c.l.b16 %v409
        %v446 = vunpack.c.l.b16 %v410
        %v447 = vunpack.c.l.b16 %v411
        %v448 = vunpack.c.l.b16 %v412
        %v449 = vunpack.c.l.b16 %v413
        %v450 = vpack.c.b16 %v435, %v434
        %v451 = vpack.c.b16 %v437, %v436
        %v452 = vpack.c.b16 %v439, %v438
        %v453 = vpack.c.b16 %v441, %v440
        %v454 = vpack.c.b16 %v443, %v442
        %v455 = vpack.c.b16 %v445, %v444
        %v456 = vpack.c.b16 %v447, %v446
        %v457 = vpack.c.b16 %v449, %v448
        %v459 = vsel %vm295, %v397, 0
        %v462 = vsel %vm295, %v450, 0
        %v465 = vsel %vm295, %v451, 0
        %v468 = vsel %vm295, %v452, 0
        %v471 = vsel %vm295, %v453, 0
        %v474 = vsel %vm295, %v454, 0
        %v477 = vsel %vm295, %v455, 0
        %v480 = vsel %vm295, %v456, 0
        %v483 = vsel %vm295, %v457, 0
        %485 = vmatpush.bf16.xpose.msra.mxu0 %v483
        %486 = vmatpush.bf16.xpose.msra.mxu0 %v480
        %487 = vmatpush.bf16.xpose.msra.mxu0 %v477
        %488 = vmatpush.bf16.xpose.msra.mxu0 %v474
        %489 = vmatpush.bf16.xpose.msra.mxu0 %v471
        %490 = vmatpush.bf16.xpose.msra.mxu0 %v468
        %491 = vmatpush.bf16.xpose.msra.mxu0 %v465
        %492 = vmatpush.bf16.xpose.msra.mxu0 %v462
        %493 = vmatmul.bf16.gmra.mxu0 %v459
        %v494 = vpop.f32.mrf.mxu0
        %v495 = vadd.f32 %v416, %v494
        %v496 = vpop.f32.mrf.mxu0
        %497 = vdwg.mxu0
        %498 = vst [vmem:[%s269] sm:$0xff] %v495
        %s499 = sand.u32 %s181, 1
        %s500 = scalar_lea.sflag [#allocation3], %s499
        %s501 = sand.u32 %s181, 1
        %s502 = smul.addr %s501, 8
        %s503 = scalar_lea.vmem [#allocation2], %s502
        // Predicated region
        $region49: #{tpu_custom_call.1} parent=47 // pred_check
          %p504 = pneg %p191
        $region50: #{tpu_custom_call.1} parent=47 // pred_check_branch
          %506 = sbr.rel (%p504) target = $region52
        $region51: #{tpu_custom_call.1} parent=47 // pred_region
          %508 = vsyncadd %s500, 0
          %s509 = smul.addr %s21, 8
          %s510 = scalar_lea.hbm %s7, %s509
          %s512 = sshll.u32 %s503, 4
          %s513 = int_to_ptr.vmem [resolvable:$true] %s512
          %s514 = sshll.u32 %s510, 4
          %s515 = int_to_ptr.hbm [resolvable:$true] %s514
          %517 = dma.vmem_to_hbm [thread:$0]  %s513, 128, %s515, %s500
        $region52: #{tpu_custom_call.1} parent=47 // pred_fallthru
          _
      $region48: #{tpu_custom_call.1} parent=5 // pred_fallthru
        _
      %p518 = scmp.le.s32.totalorder 2, %s16
      // Predicated region
      $region53: #{tpu_custom_call.1} parent=5 // pred_check
        %p519 = pneg %p518
      $region54: #{tpu_custom_call.1} parent=5 // pred_check_branch
        %521 = sbr.rel (%p519) target = $region56
      $region55: #{tpu_custom_call.1} parent=5 // pred_region
        %s522 = ssub.s32 %s16, 2
        // Predicated region
        $region57: #{tpu_custom_call.1} parent=55 // pred_check
          %p523 = pneg %p197
        $region58: #{tpu_custom_call.1} parent=55 // pred_check_branch
          %525 = sbr.rel (%p523) target = $region60
        $region59: #{tpu_custom_call.1} parent=55 // pred_region
          %s526 = sand.u32 %s182, 1
          %s527 = scalar_lea.sflag [#allocation3], %s526
          %s528 = sand.u32 %s182, 1
          %s529 = smul.addr %s528, 8
          %s530 = scalar_lea.vmem [#allocation2], %s529
          %532 = dma.done %s527, 128
        $region60: #{tpu_custom_call.1} parent=55 // pred_fallthru
          _
      $region56: #{tpu_custom_call.1} parent=5 // pred_fallthru
        _
    $region6: #{tpu_custom_call.1} parent=1 // loop_footer
      %s20 = sadd.s32 1, %s16
    $region7: #{tpu_custom_call.1} parent=1 // loop_footer_branch
      %15 = sbr.rel target = $region3
    $region8: #{tpu_custom_call.1} parent=1 // loop_exit
      _
    %533 = vsyncpa [#allocation3], 1
    %s534 = scalar_lea.sflag [#allocation3], 1
    %535 = vsyncpa %s534, 1

</llo_original>
